<compile_context>
chip_gen: v6e
topology: v6e:2x2x1
jax: 0.10.0
libtpu: 0.0.40
codegen_flags: <defaults>
</compile_context>

<pallas_src>
import functools

import numpy as np

import jax
import jax.numpy as jnp
from jax.experimental import pallas as pl
from jax.experimental.pallas import tpu as pltpu


def _coef_table(input_dim, degree):
    """Per-output-row (scale, phase, keep) table, padded to a multiple of 8 rows.

    Output row r (r < output_dim) encodes:
      band b = r // D:  b == 0            -> identity (keep = 1)
                        b >= 1, col = b-1 -> sin(2^(col//2) * x + (col%2)*pi/2)
    """
    D = input_dim
    reps = 1 + 2 * degree
    out_dim = D * reps
    R = ((out_dim + 7) // 8) * 8                      # pad rows to sublane multiple
    scale = np.ones((R,), np.float32)
    phase = np.zeros((R,), np.float32)
    keep = np.zeros((R,), np.float32)
    for r in range(out_dim):
        b = r // D
        if b == 0:
            keep[r] = 1.0                             # identity band
        else:
            col = b - 1
            scale[r] = np.float32(2.0 ** (col // 2))
            phase[r] = np.float32((col % 2) * (np.pi / 2.0))
    return np.stack([scale, phase, keep], axis=1)     # (R, 3) float32


def _freq_encode_kernel(x_ref, coef_ref, o_ref):
    # x_ref   : (D, TN) float32   -- lane-dense: N rows on the 128-wide lane axis
    # coef_ref: (R, 3)  float32   -- per-output-row [scale, phase, keep]
    # o_ref   : (TN, out_dim) f32 -- final layout, written once
    D, TN = x_ref.shape
    R = coef_ref.shape[0]
    out_dim = o_ref.shape[1]
    reps = out_dim // D
    pad = R - out_dim

    x = x_ref[...]                                    # (D, TN)

    # Replicate x once per band (sublane concat; XLU shuffles, cheap & one-shot),
    # pad rows up to a sublane multiple so the transpose below sees an
    # (8,128)-aligned operand.
    pieces = [x] * reps
    if pad:
        pieces.append(jnp.zeros((pad, TN), jnp.float32))
    xr = jnp.concatenate(pieces, axis=0) if len(pieces) > 1 else pieces[0]  # (R, TN)

    scale = coef_ref[:, 0:1]                          # (R, 1), broadcast over lanes
    phase = coef_ref[:, 1:2]
    keep = coef_ref[:, 2:3]

    # One batched, sublane-packed sin over all frequency bands (exact per band,
    # no recurrence error).  Identity rows are blended back in with a cheap
    # arithmetic select (keep in {0,1}).
    s = jnp.sin(xr * scale + phase)                   # (R, TN)
    p = xr * keep + s * (1.0 - keep)                  # (R, TN)

    # Single XLU transpose to the output layout; slice off the pad rows and
    # store the full (TN, out_dim) tile (contiguous HBM writeback).
    t = jnp.transpose(p, (1, 0))                      # (TN, R)
    o_ref[...] = t[:, :out_dim]


@functools.partial(jax.jit, static_argnames=("degree", "tile_rows"))
def freq_encode_pallas(x_flat, *, degree, tile_rows=8192):
    """x_flat: (N, input_dim) -> (N, input_dim * (1 + 2*degree)) float32.

    tile_rows: rows per grid step.  8192 keeps the double-buffered output tile
    (lane-padded to 128) around ~8 MiB and total VMEM ~16-20 MiB -> safe on
    v5e/v6e/v7x.  Bump to 16384 on v6e/v7x for fewer, better-amortized steps.
    """
    x_flat = x_flat.astype(jnp.float32)
    N, D = x_flat.shape
    reps = 1 + 2 * degree
    out_dim = D * reps
    coef = jnp.asarray(_coef_table(D, degree))        # (R, 3) float32, R % 8 == 0
    R = coef.shape[0]

    # Lane-dense input: feature dim on sublanes, big N axis on lanes.
    # (One small XLA pass over 12 B/row; cheaper than an in-kernel transpose of
    #  the lane-sparse (TN, D) tile.)
    x_t = x_flat.T                                    # (D, N)

    # Row tile: multiple of 128 lanes; no wrapper-side padding -- the boundary
    # block (if N % TN != 0) is handled by Pallas' partial-block masking.
    tr = max(128, (int(tile_rows) // 128) * 128)
    TN = min(tr, ((N + 127) // 128) * 128)
    grid = (pl.cdiv(N, TN),)

    return pl.pallas_call(
        _freq_encode_kernel,
        out_shape=jax.ShapeDtypeStruct((N, out_dim), jnp.float32),
        grid_spec=pltpu.PrefetchScalarGridSpec(
            num_scalar_prefetch=0,
            grid=grid,
            in_specs=[
                pl.BlockSpec((D, TN), lambda i: (0, i)),   # input rows on lanes
                pl.BlockSpec((R, 3), lambda i: (0, 0)),    # tiny constant table
            ],
            out_specs=pl.BlockSpec((TN, out_dim), lambda i: (i, 0)),
        ),
        compiler_params=pltpu.CompilerParams(
            # "parallel" lets v7x shard row tiles across its two TensorCores
            # (pltpu.CORE_PARALLEL is an alternative if explicit core split is
            #  preferred); neutral on single-core v5e/v6e.
            dimension_semantics=("parallel",),
            # Raise the scoped-VMEM check so larger tile_rows fit on v6e/v7x;
            # actual usage at the default tile is ~16-20 MiB.
            vmem_limit_bytes=64 * 1024 * 1024,
        ),
    )(x_t, coef)


class FreqEncoder:
    """JAX/Pallas port of lidarnerf FreqEncoder (forward only)."""

    def __init__(self, input_dim=3, degree=4):
        self.input_dim = input_dim
        self.degree = degree
        self.output_dim = input_dim + input_dim * 2 * degree

    def __repr__(self):
        return (f"FreqEncoder: input_dim={self.input_dim} "
                f"degree={self.degree} output_dim={self.output_dim}")

    def __call__(self, inputs):
        prefix_shape = list(inputs.shape[:-1])
        x = inputs.reshape(-1, self.input_dim).astype(jnp.float32)
        out = freq_encode_pallas(x, degree=self.degree)
        return out.reshape(prefix_shape + [self.output_dim])


def _reference_freq_encode(x, degree):
    """Pure-JAX reference matching the CUDA kernel's output layout."""
    parts = [x]
    for f in range(degree):
        xf = x * (2.0 ** f)
        parts.append(jnp.sin(xf))
        parts.append(jnp.cos(xf))
    return jnp.concatenate(parts, axis=-1)


if __name__ == "__main__":
    key = jax.random.PRNGKey(0)
    # Small shapes consistent with the module: batch=2, 64 rays, input_dim=3.
    B, S, input_dim, degree = 2, 64, 3, 4
    x = jax.random.normal(key, (B, S, input_dim), dtype=jnp.float32)

    enc = FreqEncoder(input_dim=input_dim, degree=degree)
    out = jax.block_until_ready(enc(x))
    assert out.shape == (B, S, enc.output_dim), out.shape

    ref = _reference_freq_encode(x.reshape(-1, input_dim), degree).reshape(
        B, S, enc.output_dim)
    assert jnp.allclose(out, ref, atol=5e-5, rtol=1e-5), \
        float(jnp.max(jnp.abs(out - ref)))

    # Multi-step pipelined path: N=384 rows with 128-row tiles -> grid of 3.
    x2 = jax.random.normal(jax.random.PRNGKey(1), (384, input_dim),
                           dtype=jnp.float32)
    out2 = jax.block_until_ready(
        freq_encode_pallas(x2, degree=degree, tile_rows=128))
    ref2 = _reference_freq_encode(x2, degree)
    assert out2.shape == ref2.shape, out2.shape
    assert jnp.allclose(out2, ref2, atol=5e-5, rtol=1e-5), \
        float(jnp.max(jnp.abs(out2 - ref2)))

    print("KERNEL_OK")
</pallas_src>

<mosaic_0001>
module attributes {stable_mosaic.version = 11 : i64} {
  func.func @_freq_encode_kernel(%arg0: i32, %arg1: memref<3x128xf32, #tpu.memory_space<vmem>>, %arg2: memref<32x3xf32, #tpu.memory_space<vmem>>, %arg3: memref<128x27xf32, #tpu.memory_space<vmem>>) attributes {dimension_semantics = [#tpu.dimension_semantics<parallel>], iteration_bounds = array<i64: 1>, scalar_prefetch = 0 : i64, scratch_operands = 0 : i64, tpu.core_type = #tpu.core_type<tc>, window_params = [{transform_indices = @transform_0, window_bounds = array<i64: 3, 128>}, {pipeline_mode = #tpu.pipeline_mode<synchronous>, transform_indices = @transform_1, window_bounds = array<i64: 32, 3>}, {transform_indices = @transform_2, window_bounds = array<i64: 128, 27>}]} {
    %c0 = arith.constant 0 : index
    %c0_0 = arith.constant 0 : index
    %0 = vector.load %arg1[%c0, %c0_0] : memref<3x128xf32, #tpu.memory_space<vmem>>, vector<3x128xf32>
    %cst = arith.constant 0.000000e+00 : f32
    %1 = vector.broadcast %cst : f32 to vector<5x128xf32>
    %2 = tpu.concatenate %0, %0, %0, %0, %0, %0, %0, %0, %0, %1 in 0 : vector<3x128xf32>, vector<3x128xf32>, vector<3x128xf32>, vector<3x128xf32>, vector<3x128xf32>, vector<3x128xf32>, vector<3x128xf32>, vector<3x128xf32>, vector<3x128xf32>, vector<5x128xf32> -> vector<32x128xf32>
    %c0_1 = arith.constant 0 : index
    %c0_2 = arith.constant 0 : index
    %3 = vector.load %arg2[%c0_1, %c0_2] : memref<32x3xf32, #tpu.memory_space<vmem>>, vector<32x1xf32>
    %c0_3 = arith.constant 0 : index
    %c1 = arith.constant 1 : index
    %4 = vector.load %arg2[%c0_3, %c1] : memref<32x3xf32, #tpu.memory_space<vmem>>, vector<32x1xf32>
    %c0_4 = arith.constant 0 : index
    %c2 = arith.constant 2 : index
    %5 = vector.load %arg2[%c0_4, %c2] : memref<32x3xf32, #tpu.memory_space<vmem>>, vector<32x1xf32>
    %6 = vector.broadcast %3 : vector<32x1xf32> to vector<32x128xf32>
    %7 = arith.mulf %2, %6 : vector<32x128xf32>
    %8 = vector.broadcast %4 : vector<32x1xf32> to vector<32x128xf32>
    %9 = arith.addf %7, %8 : vector<32x128xf32>
    %10 = math.sin %9 : vector<32x128xf32>
    %11 = vector.broadcast %5 : vector<32x1xf32> to vector<32x128xf32>
    %12 = arith.mulf %2, %11 : vector<32x128xf32>
    %cst_5 = arith.constant 1.000000e+00 : f32
    %13 = vector.broadcast %cst_5 : f32 to vector<32x1xf32>
    %14 = arith.subf %13, %5 : vector<32x1xf32>
    %15 = vector.broadcast %14 : vector<32x1xf32> to vector<32x128xf32>
    %16 = arith.mulf %10, %15 : vector<32x128xf32>
    %17 = arith.addf %12, %16 : vector<32x128xf32>
    %18 = tpu.transpose %17, [1, 0] : vector<32x128xf32> -> vector<128x32xf32>
    %19 = vector.extract_strided_slice %18 {offsets = [0, 0], sizes = [128, 27], strides = [1, 1]} : vector<128x32xf32> to vector<128x27xf32>
    %c0_6 = arith.constant 0 : index
    %c0_7 = arith.constant 0 : index
    %20 = vector.load %arg3[%c0_6, %c0_7] : memref<128x27xf32, #tpu.memory_space<vmem>>, vector<128x27xf32>
    tpu.vector_store %arg3[%c0_6, %c0_7], %19 {strides = array<i32>} : memref<128x27xf32, #tpu.memory_space<vmem>>, vector<128x27xf32>,
    return
  }
  func.func @transform_0(%arg0: i32) -> (i32, i32) {
    %c0_i32 = arith.constant 0 : i32
    %c0_i32_0 = arith.constant 0 : i32
    return %c0_i32, %arg0 : i32, i32
  }
  func.func @transform_1(%arg0: i32) -> (i32, i32) {
    %c0_i32 = arith.constant 0 : i32
    %c0_i32_0 = arith.constant 0 : i32
    %c0_i32_1 = arith.constant 0 : i32
    return %c0_i32, %c0_i32_0 : i32, i32
  }
  func.func @transform_2(%arg0: i32) -> (i32, i32) {
    %c0_i32 = arith.constant 0 : i32
    %c0_i32_0 = arith.constant 0 : i32
    return %arg0, %c0_i32 : i32, i32
  }
}

</mosaic_0001>

<llo_original>
// kernel: freq_encode_pallas.1
$region0: #{freq_encode_pallas.1}
  #allocation0 [shape = 'u32[]', space=smem, size = 0x4, offset = 0x4, fixed_abs, tag = 'smem constant byte address 0x4 - core index']
  #allocation1 [shape = 'u32[144,128]{1,0:T(1,128)}', space=vmem, size = 0x12000, scoped, tag = 'internal scratch']
  %s0 = inlined_call_operand.hbm [shape: f32[3,128], index: 0, kind: input, shape index: {}]
  %s1 = inlined_call_operand.hbm [shape: f32[32,3], index: 1, kind: input, shape index: {}]
  %s2 = inlined_call_operand.vmem [shape: f32[128,27], index: 2, kind: output, shape index: {}]
  %s3 = sld [smem:[#allocation0]]
  $region26: #{freq_encode_pallas.1} parent=0
    _
  %s5 = ssub.s32 1, %s3
  %s6 = scalar_select 0, %s5, %s3
  $region1: #{freq_encode_pallas.1} parent=0
    #allocation2 [shape = 'u8[2048]{0}', space=vmem, size = 0x800, scoped, tag = 'input window, operand 0, single buffered']
    #allocation3 [shape = 's32[1]{0}', space=sflag, size = 0x4, scoped, tag = 'scoped memory for freq_encode_pallas.1']
    #allocation4 [shape = 'u8[16384]{0}', space=vmem, size = 0x4000, scoped, tag = 'input window, operand 1, single buffered']
    #allocation5 [shape = 's32[1]{0}', space=sflag, size = 0x4, scoped, tag = 'scoped memory for freq_encode_pallas.1']
    %7 = vsyncpa [#allocation3], 0
    %8 = vsyncpa [#allocation5], 0
    // Predicated region
    $region2: #{freq_encode_pallas.1} parent=1 // pred_check
      _
    $region3: #{freq_encode_pallas.1} parent=1 // pred_check_branch
      %10 = sbr.rel (0) target = $region5
    $region4: #{freq_encode_pallas.1} parent=1 // pred_region
      %s12 = ssub.s32 64, 64
      %13 = vsyncadd [#allocation3], %s12
      %s15 = sshll.u32 [#allocation2], 4
      %s16 = int_to_ptr.vmem [resolvable:$true] %s15
      %18 = dma.hbm_to_vmem [thread:$0]  %s0, 64, %s16, [#allocation3]
    $region5: #{freq_encode_pallas.1} parent=1 // pred_fallthru
      _
    // Predicated region
    $region6: #{freq_encode_pallas.1} parent=1 // pred_check
      _
    $region7: #{freq_encode_pallas.1} parent=1 // pred_check_branch
      %20 = sbr.rel (0) target = $region9
    $region8: #{freq_encode_pallas.1} parent=1 // pred_region
      %s22 = ssub.s32 512, 512
      %23 = vsyncadd [#allocation5], %s22
      %s24 = sshll.u32 [#allocation4], 4
      %s25 = int_to_ptr.vmem [resolvable:$true] %s24
      %30 = dma.hbm_to_vmem [thread:$0]  %s1, 512, %s25, [#allocation5], 128, 128, 8
    $region9: #{freq_encode_pallas.1} parent=1 // pred_fallthru
      _
    // Predicated region
    $region10: #{freq_encode_pallas.1} parent=1 // pred_check
      _
    $region11: #{freq_encode_pallas.1} parent=1 // pred_check_branch
      %32 = sbr.rel (0) target = $region13
    $region12: #{freq_encode_pallas.1} parent=1 // pred_region
      %33 = dma.done [#allocation3], 64
    $region13: #{freq_encode_pallas.1} parent=1 // pred_fallthru
      _
    // Predicated region
    $region14: #{freq_encode_pallas.1} parent=1 // pred_check
      _
    $region15: #{freq_encode_pallas.1} parent=1 // pred_check_branch
      %35 = sbr.rel (0) target = $region17
    $region16: #{freq_encode_pallas.1} parent=1 // pred_region
      %36 = dma.done [#allocation5], 512
    $region17: #{freq_encode_pallas.1} parent=1 // pred_fallthru
      _
    %v37 = vld [vmem:[#allocation2] sm:$0x7]
    %v39 = vrot.slane %v37, 5
    %v41 = vrot.slane %v37, 2
    %v43 = vrot.slane %v37, 7
    %v45 = vrot.slane %v37, 4
    %v47 = vrot.slane %v37, 1
    %v49 = vrot.slane %v37, 6
    %v51 = vrot.slane %v37, 3
    %vm53 = vcmask 1042432
    %v54 = vsel %vm53, %v37, %v39
    %vm55 = vcmask 1045504
    %v56 = vsel %vm55, %v54, %v41
    %vm57 = vcmask 1040384
    %v58 = vsel %vm57, %v41, %v43
    %vm59 = vcmask 1043456
    %v60 = vsel %vm59, %v58, %v45
    %vm61 = vcmask 1046528
    %v62 = vsel %vm61, %v60, %v47
    %vm63 = vcmask 1041408
    %v64 = vsel %vm63, %v47, %v49
    %vm65 = vcmask 1044480
    %v66 = vsel %vm65, %v64, %v51
    %v67 = vsel %vm53, %v37, 0.0
    %v68 = vld [vmem:[#allocation4] sm:$0xff]
    %v69 = vld [vmem:[#allocation4 + $0x8] sm:$0xff]
    %v70 = vld [vmem:[#allocation4 + $0x10] sm:$0xff]
    %v71 = vld [vmem:[#allocation4 + $0x18] sm:$0xff]
    %73 = vset.pattern.permute.xlu0 0
    %74 = vperm.xlu0 %73, %v68
    %v75 = vpop.permute.xlu0 %74
    %78 = vset.pattern.permute.xlu0 0
    %79 = vperm.xlu0 %78, %v69
    %v80 = vpop.permute.xlu0 %79
    %83 = vset.pattern.permute.xlu0 0
    %84 = vperm.xlu0 %83, %v70
    %v85 = vpop.permute.xlu0 %84
    %88 = vset.pattern.permute.xlu0 0
    %89 = vperm.xlu0 %88, %v71
    %v90 = vpop.permute.xlu0 %89
    %v92 = vmul.f32 %v56, %v75
    %v93 = vmul.f32 %v62, %v80
    %v94 = vmul.f32 %v66, %v85
    %v95 = vmul.f32 %v67, %v90
    %96 = vset.pattern.permute.xlu0 1
    %97 = vperm.xlu0 %96, %v68
    %v98 = vpop.permute.xlu0 %97
    %100 = vset.pattern.permute.xlu0 1
    %101 = vperm.xlu0 %100, %v69
    %v102 = vpop.permute.xlu0 %101
    %104 = vset.pattern.permute.xlu0 1
    %105 = vperm.xlu0 %104, %v70
    %v106 = vpop.permute.xlu0 %105
    %108 = vset.pattern.permute.xlu0 1
    %109 = vperm.xlu0 %108, %v71
    %v110 = vpop.permute.xlu0 %109
    %v112 = vadd.f32 %v92, %v98
    %v113 = vadd.f32 %v93, %v102
    %v114 = vadd.f32 %v94, %v106
    %v115 = vadd.f32 %v95, %v110
    %v116 = vand.u32 2147483647, %v112
    %vm117 = vcmp.le.f32.partialorder %v116, 0.7853982
    %vm118 = vcmp.lt.s32.totalorder %v112, 0
    %v119 = vand.u32 %v112, 2139095040
    %v120 = vshrl.u32 %v119, 23
    %v121 = vsub.s32 %v120, 127
    %v122 = vand.u32 2147483647, %v112
    %v123 = vand.u32 %v122, 8388607
    %v124 = vor.u32 %v123, 8388608
    %v125 = vsub.s32 0, %v124
    %v126 = vadd.s32 %v121, 1
    %vm127 = vcmp.gt.s32.totalorder %v126, 0
    %v128 = vsel %vm127, %v126, 0
    %v129 = vshrl.u32 %v128, 5
    %v130 = vand.u32 %v128, 31
    %v131 = vsub.s32 32, %v130
    %v132 = vshrl.u32 683565275, %v131
    %v133 = vshll.u32 683565275, %v130
    %v134 = vshrl.u32 2475754826, %v131
    %v135 = vor.u32 %v133, %v134
    %v136 = vshll.u32 2475754826, %v130
    %v137 = vshrl.u32 2131351028, %v131
    %v138 = vor.u32 %v136, %v137
    %v139 = vshll.u32 2131351028, %v130
    %v140 = vshrl.u32 2102212464, %v131
    %v141 = vor.u32 %v139, %v140
    %v142 = vshll.u32 2102212464, %v130
    %v143 = vshrl.u32 920167782, %v131
    %v144 = vor.u32 %v142, %v143
    %v145 = vshll.u32 920167782, %v130
    %v146 = vshrl.u32 1326507024, %v131
    %v147 = vor.u32 %v145, %v146
    %vm148 = vcmp.lt.s32.totalorder %v129, 1
    %vm149 = vcmp.lt.s32.totalorder %v129, 2
    %vm150 = vcmp.lt.s32.totalorder %v129, 3
    %vm151 = vcmp.lt.s32.totalorder %v129, 4
    %v152 = vsel %vm148, %v132, %v135
    %v153 = vsel %vm151, %v141, 2102212464
    %v154 = vsel %vm150, %v138, %v153
    %v155 = vsel %vm149, %v152, %v154
    %v156 = vsel %vm148, %v135, %v138
    %v157 = vsel %vm151, %v144, 920167782
    %v158 = vsel %vm150, %v141, %v157
    %v159 = vsel %vm149, %v156, %v158
    %v160 = vsel %vm148, %v138, %v141
    %v161 = vsel %vm151, %v147, 1326507024
    %v162 = vsel %vm150, %v144, %v161
    %v163 = vsel %vm149, %v160, %v162
    %v164 = vshll.u32 %v124, 8
    %v165 = vmul.u32.u64.compose %v164, %v163
    %v166 = vextract.low.u32 %v165
    %v167 = vextract.high.u32 %v165
    %v168 = vmul.u32.u64.compose %v164, %v159
    %v169 = vextract.low.u32 %v168
    %v170 = vextract.high.u32 %v168
    %v171 = vmul.u32 %v164, %v155
    %v172 = vadd.s32 %v167, %v169
    %vm173 = vc.u32 %v167, %v169
    %v174 = vadd.s32 %v170, 1
    %v175 = vsel %vm173, %v174, %v170
    %v176 = vadd.s32 %v171, %v175
    %v177 = vadd.s32 %v176, 536870912
    %v178 = vshrl.u32 %v177, 30
    %v179 = vshll.u32 %v178, 30
    %v180 = vsub.s32 %v176, %v179
    %vm181 = vcmp.lt.s32.totalorder %v180, 0
    %v182 = vsub.s32 0, %v180
    %v183 = vsel %vm181, %v182, %v180
    %v184 = vclz %v183
    %v185 = vsub.s32 %v184, 2
    %vm186 = vcmp.gt.s32.totalorder 0, %v185
    %v187 = vsel %vm186, 0, %v185
    %v188 = vsub.s32 32, %v187
    %v189 = vshll.u32 %v180, %v187
    %v190 = vshrl.u32 %v172, %v188
    %v191 = vor.u32 %v189, %v190
    %v192 = vsub.s32 4294967266, %v187
    %v193 = vadd.s32 %v192, 127
    %v194 = vshll.u32 %v193, 23
    %v195 = vor.u32 4788187, %v194
    %v196 = vand.u32 2147483647, %v195
    %v198 = vcvt.s32.f32 %v191
    %v199 = vmul.f32 %v198, %v196
    %v200 = vxor.u32 %v199, 2147483648
    %v201 = vsel %vm118, %v200, %v199
    %v202 = vsub.s32 4, %v178
    %v203 = vsel %vm118, %v202, %v178
    %v204 = vsel %vm117, %v112, %v201
    %v205 = vsel %vm117, 0, %v203
    %v206 = vcosq.f32.pop %v204
    %v207 = vsinq.f32.pop %v204
    %vm208 = vweird.f32 %v112
    %v209 = vadd.s32 %v205, 3
    %v210 = vand.u32 %v209, 3
    %vm211 = vcmp.lt.s32.totalorder %v210, 2
    %vm212 = vcmp.eq.s32.totalorder %v210, 0
    %v213 = vxor.u32 %v207, 2147483648
    %v214 = vsel %vm212, %v206, %v213
    %vm215 = vcmp.eq.s32.totalorder %v210, 2
    %v216 = vxor.u32 %v206, 2147483648
    %v217 = vsel %vm215, %v216, %v207
    %v218 = vsel %vm211, %v214, %v217
    %v219 = vsel %vm208, nan, %v218
    %v220 = vand.u32 2147483647, %v113
    %vm221 = vcmp.le.f32.partialorder %v220, 0.7853982
    %vm222 = vcmp.lt.s32.totalorder %v113, 0
    %v223 = vand.u32 %v113, 2139095040
    %v224 = vshrl.u32 %v223, 23
    %v225 = vsub.s32 %v224, 127
    %v226 = vand.u32 2147483647, %v113
    %v227 = vand.u32 %v226, 8388607
    %v228 = vor.u32 %v227, 8388608
    %v229 = vsub.s32 0, %v228
    %v230 = vadd.s32 %v225, 1
    %vm231 = vcmp.gt.s32.totalorder %v230, 0
    %v232 = vsel %vm231, %v230, 0
    %v233 = vshrl.u32 %v232, 5
    %v234 = vand.u32 %v232, 31
    %v235 = vsub.s32 32, %v234
    %v236 = vshrl.u32 683565275, %v235
    %v237 = vshll.u32 683565275, %v234
    %v238 = vshrl.u32 2475754826, %v235
    %v239 = vor.u32 %v237, %v238
    %v240 = vshll.u32 2475754826, %v234
    %v241 = vshrl.u32 2131351028, %v235
    %v242 = vor.u32 %v240, %v241
    %v243 = vshll.u32 2131351028, %v234
    %v244 = vshrl.u32 2102212464, %v235
    %v245 = vor.u32 %v243, %v244
    %v246 = vshll.u32 2102212464, %v234
    %v247 = vshrl.u32 920167782, %v235
    %v248 = vor.u32 %v246, %v247
    %v249 = vshll.u32 920167782, %v234
    %v250 = vshrl.u32 1326507024, %v235
    %v251 = vor.u32 %v249, %v250
    %vm252 = vcmp.lt.s32.totalorder %v233, 1
    %vm253 = vcmp.lt.s32.totalorder %v233, 2
    %vm254 = vcmp.lt.s32.totalorder %v233, 3
    %vm255 = vcmp.lt.s32.totalorder %v233, 4
    %v256 = vsel %vm252, %v236, %v239
    %v257 = vsel %vm255, %v245, 2102212464
    %v258 = vsel %vm254, %v242, %v257
    %v259 = vsel %vm253, %v256, %v258
    %v260 = vsel %vm252, %v239, %v242
    %v261 = vsel %vm255, %v248, 920167782
    %v262 = vsel %vm254, %v245, %v261
    %v263 = vsel %vm253, %v260, %v262
    %v264 = vsel %vm252, %v242, %v245
    %v265 = vsel %vm255, %v251, 1326507024
    %v266 = vsel %vm254, %v248, %v265
    %v267 = vsel %vm253, %v264, %v266
    %v268 = vshll.u32 %v228, 8
    %v269 = vmul.u32.u64.compose %v268, %v267
    %v270 = vextract.low.u32 %v269
    %v271 = vextract.high.u32 %v269
    %v272 = vmul.u32.u64.compose %v268, %v263
    %v273 = vextract.low.u32 %v272
    %v274 = vextract.high.u32 %v272
    %v275 = vmul.u32 %v268, %v259
    %v276 = vadd.s32 %v271, %v273
    %vm277 = vc.u32 %v271, %v273
    %v278 = vadd.s32 %v274, 1
    %v279 = vsel %vm277, %v278, %v274
    %v280 = vadd.s32 %v275, %v279
    %v281 = vadd.s32 %v280, 536870912
    %v282 = vshrl.u32 %v281, 30
    %v283 = vshll.u32 %v282, 30
    %v284 = vsub.s32 %v280, %v283
    %vm285 = vcmp.lt.s32.totalorder %v284, 0
    %v286 = vsub.s32 0, %v284
    %v287 = vsel %vm285, %v286, %v284
    %v288 = vclz %v287
    %v289 = vsub.s32 %v288, 2
    %vm290 = vcmp.gt.s32.totalorder 0, %v289
    %v291 = vsel %vm290, 0, %v289
    %v292 = vsub.s32 32, %v291
    %v293 = vshll.u32 %v284, %v291
    %v294 = vshrl.u32 %v276, %v292
    %v295 = vor.u32 %v293, %v294
    %v296 = vsub.s32 4294967266, %v291
    %v297 = vadd.s32 %v296, 127
    %v298 = vshll.u32 %v297, 23
    %v299 = vor.u32 4788187, %v298
    %v300 = vand.u32 2147483647, %v299
    %v302 = vcvt.s32.f32 %v295
    %v303 = vmul.f32 %v302, %v300
    %v304 = vxor.u32 %v303, 2147483648
    %v305 = vsel %vm222, %v304, %v303
    %v306 = vsub.s32 4, %v282
    %v307 = vsel %vm222, %v306, %v282
    %v308 = vsel %vm221, %v113, %v305
    %v309 = vsel %vm221, 0, %v307
    %v310 = vcosq.f32.pop %v308
    %v311 = vsinq.f32.pop %v308
    %vm312 = vweird.f32 %v113
    %v313 = vadd.s32 %v309, 3
    %v314 = vand.u32 %v313, 3
    %vm315 = vcmp.lt.s32.totalorder %v314, 2
    %vm316 = vcmp.eq.s32.totalorder %v314, 0
    %v317 = vxor.u32 %v311, 2147483648
    %v318 = vsel %vm316, %v310, %v317
    %vm319 = vcmp.eq.s32.totalorder %v314, 2
    %v320 = vxor.u32 %v310, 2147483648
    %v321 = vsel %vm319, %v320, %v311
    %v322 = vsel %vm315, %v318, %v321
    %v323 = vsel %vm312, nan, %v322
    %v324 = vand.u32 2147483647, %v114
    %vm325 = vcmp.le.f32.partialorder %v324, 0.7853982
    %vm326 = vcmp.lt.s32.totalorder %v114, 0
    %v327 = vand.u32 %v114, 2139095040
    %v328 = vshrl.u32 %v327, 23
    %v329 = vsub.s32 %v328, 127
    %v330 = vand.u32 2147483647, %v114
    %v331 = vand.u32 %v330, 8388607
    %v332 = vor.u32 %v331, 8388608
    %v333 = vsub.s32 0, %v332
    %v334 = vadd.s32 %v329, 1
    %vm335 = vcmp.gt.s32.totalorder %v334, 0
    %v336 = vsel %vm335, %v334, 0
    %v337 = vshrl.u32 %v336, 5
    %v338 = vand.u32 %v336, 31
    %v339 = vsub.s32 32, %v338
    %v340 = vshrl.u32 683565275, %v339
    %v341 = vshll.u32 683565275, %v338
    %v342 = vshrl.u32 2475754826, %v339
    %v343 = vor.u32 %v341, %v342
    %v344 = vshll.u32 2475754826, %v338
    %v345 = vshrl.u32 2131351028, %v339
    %v346 = vor.u32 %v344, %v345
    %v347 = vshll.u32 2131351028, %v338
    %v348 = vshrl.u32 2102212464, %v339
    %v349 = vor.u32 %v347, %v348
    %v350 = vshll.u32 2102212464, %v338
    %v351 = vshrl.u32 920167782, %v339
    %v352 = vor.u32 %v350, %v351
    %v353 = vshll.u32 920167782, %v338
    %v354 = vshrl.u32 1326507024, %v339
    %v355 = vor.u32 %v353, %v354
    %vm356 = vcmp.lt.s32.totalorder %v337, 1
    %vm357 = vcmp.lt.s32.totalorder %v337, 2
    %vm358 = vcmp.lt.s32.totalorder %v337, 3
    %vm359 = vcmp.lt.s32.totalorder %v337, 4
    %v360 = vsel %vm356, %v340, %v343
    %v361 = vsel %vm359, %v349, 2102212464
    %v362 = vsel %vm358, %v346, %v361
    %v363 = vsel %vm357, %v360, %v362
    %v364 = vsel %vm356, %v343, %v346
    %v365 = vsel %vm359, %v352, 920167782
    %v366 = vsel %vm358, %v349, %v365
    %v367 = vsel %vm357, %v364, %v366
    %v368 = vsel %vm356, %v346, %v349
    %v369 = vsel %vm359, %v355, 1326507024
    %v370 = vsel %vm358, %v352, %v369
    %v371 = vsel %vm357, %v368, %v370
    %v372 = vshll.u32 %v332, 8
    %v373 = vmul.u32.u64.compose %v372, %v371
    %v374 = vextract.low.u32 %v373
    %v375 = vextract.high.u32 %v373
    %v376 = vmul.u32.u64.compose %v372, %v367
    %v377 = vextract.low.u32 %v376
    %v378 = vextract.high.u32 %v376
    %v379 = vmul.u32 %v372, %v363
    %v380 = vadd.s32 %v375, %v377
    %vm381 = vc.u32 %v375, %v377
    %v382 = vadd.s32 %v378, 1
    %v383 = vsel %vm381, %v382, %v378
    %v384 = vadd.s32 %v379, %v383
    %v385 = vadd.s32 %v384, 536870912
    %v386 = vshrl.u32 %v385, 30
    %v387 = vshll.u32 %v386, 30
    %v388 = vsub.s32 %v384, %v387
    %vm389 = vcmp.lt.s32.totalorder %v388, 0
    %v390 = vsub.s32 0, %v388
    %v391 = vsel %vm389, %v390, %v388
    %v392 = vclz %v391
    %v393 = vsub.s32 %v392, 2
    %vm394 = vcmp.gt.s32.totalorder 0, %v393
    %v395 = vsel %vm394, 0, %v393
    %v396 = vsub.s32 32, %v395
    %v397 = vshll.u32 %v388, %v395
    %v398 = vshrl.u32 %v380, %v396
    %v399 = vor.u32 %v397, %v398
    %v400 = vsub.s32 4294967266, %v395
    %v401 = vadd.s32 %v400, 127
    %v402 = vshll.u32 %v401, 23
    %v403 = vor.u32 4788187, %v402
    %v404 = vand.u32 2147483647, %v403
    %v406 = vcvt.s32.f32 %v399
    %v407 = vmul.f32 %v406, %v404
    %v408 = vxor.u32 %v407, 2147483648
    %v409 = vsel %vm326, %v408, %v407
    %v410 = vsub.s32 4, %v386
    %v411 = vsel %vm326, %v410, %v386
    %v412 = vsel %vm325, %v114, %v409
    %v413 = vsel %vm325, 0, %v411
    %v414 = vcosq.f32.pop %v412
    %v415 = vsinq.f32.pop %v412
    %vm416 = vweird.f32 %v114
    %v417 = vadd.s32 %v413, 3
    %v418 = vand.u32 %v417, 3
    %vm419 = vcmp.lt.s32.totalorder %v418, 2
    %vm420 = vcmp.eq.s32.totalorder %v418, 0
    %v421 = vxor.u32 %v415, 2147483648
    %v422 = vsel %vm420, %v414, %v421
    %vm423 = vcmp.eq.s32.totalorder %v418, 2
    %v424 = vxor.u32 %v414, 2147483648
    %v425 = vsel %vm423, %v424, %v415
    %v426 = vsel %vm419, %v422, %v425
    %v427 = vsel %vm416, nan, %v426
    %v428 = vand.u32 2147483647, %v115
    %vm429 = vcmp.le.f32.partialorder %v428, 0.7853982
    %vm430 = vcmp.lt.s32.totalorder %v115, 0
    %v431 = vand.u32 %v115, 2139095040
    %v432 = vshrl.u32 %v431, 23
    %v433 = vsub.s32 %v432, 127
    %v434 = vand.u32 2147483647, %v115
    %v435 = vand.u32 %v434, 8388607
    %v436 = vor.u32 %v435, 8388608
    %v437 = vsub.s32 0, %v436
    %v438 = vadd.s32 %v433, 1
    %vm439 = vcmp.gt.s32.totalorder %v438, 0
    %v440 = vsel %vm439, %v438, 0
    %v441 = vshrl.u32 %v440, 5
    %v442 = vand.u32 %v440, 31
    %v443 = vsub.s32 32, %v442
    %v444 = vshrl.u32 683565275, %v443
    %v445 = vshll.u32 683565275, %v442
    %v446 = vshrl.u32 2475754826, %v443
    %v447 = vor.u32 %v445, %v446
    %v448 = vshll.u32 2475754826, %v442
    %v449 = vshrl.u32 2131351028, %v443
    %v450 = vor.u32 %v448, %v449
    %v451 = vshll.u32 2131351028, %v442
    %v452 = vshrl.u32 2102212464, %v443
    %v453 = vor.u32 %v451, %v452
    %v454 = vshll.u32 2102212464, %v442
    %v455 = vshrl.u32 920167782, %v443
    %v456 = vor.u32 %v454, %v455
    %v457 = vshll.u32 920167782, %v442
    %v458 = vshrl.u32 1326507024, %v443
    %v459 = vor.u32 %v457, %v458
    %vm460 = vcmp.lt.s32.totalorder %v441, 1
    %vm461 = vcmp.lt.s32.totalorder %v441, 2
    %vm462 = vcmp.lt.s32.totalorder %v441, 3
    %vm463 = vcmp.lt.s32.totalorder %v441, 4
    %v464 = vsel %vm460, %v444, %v447
    %v465 = vsel %vm463, %v453, 2102212464
    %v466 = vsel %vm462, %v450, %v465
    %v467 = vsel %vm461, %v464, %v466
    %v468 = vsel %vm460, %v447, %v450
    %v469 = vsel %vm463, %v456, 920167782
    %v470 = vsel %vm462, %v453, %v469
    %v471 = vsel %vm461, %v468, %v470
    %v472 = vsel %vm460, %v450, %v453
    %v473 = vsel %vm463, %v459, 1326507024
    %v474 = vsel %vm462, %v456, %v473
    %v475 = vsel %vm461, %v472, %v474
    %v476 = vshll.u32 %v436, 8
    %v477 = vmul.u32.u64.compose %v476, %v475
    %v478 = vextract.low.u32 %v477
    %v479 = vextract.high.u32 %v477
    %v480 = vmul.u32.u64.compose %v476, %v471
    %v481 = vextract.low.u32 %v480
    %v482 = vextract.high.u32 %v480
    %v483 = vmul.u32 %v476, %v467
    %v484 = vadd.s32 %v479, %v481
    %vm485 = vc.u32 %v479, %v481
    %v486 = vadd.s32 %v482, 1
    %v487 = vsel %vm485, %v486, %v482
    %v488 = vadd.s32 %v483, %v487
    %v489 = vadd.s32 %v488, 536870912
    %v490 = vshrl.u32 %v489, 30
    %v491 = vshll.u32 %v490, 30
    %v492 = vsub.s32 %v488, %v491
    %vm493 = vcmp.lt.s32.totalorder %v492, 0
    %v494 = vsub.s32 0, %v492
    %v495 = vsel %vm493, %v494, %v492
    %v496 = vclz %v495
    %v497 = vsub.s32 %v496, 2
    %vm498 = vcmp.gt.s32.totalorder 0, %v497
    %v499 = vsel %vm498, 0, %v497
    %v500 = vsub.s32 32, %v499
    %v501 = vshll.u32 %v492, %v499
    %v502 = vshrl.u32 %v484, %v500
    %v503 = vor.u32 %v501, %v502
    %v504 = vsub.s32 4294967266, %v499
    %v505 = vadd.s32 %v504, 127
    %v506 = vshll.u32 %v505, 23
    %v507 = vor.u32 4788187, %v506
    %v508 = vand.u32 2147483647, %v507
    %v510 = vcvt.s32.f32 %v503
    %v511 = vmul.f32 %v510, %v508
    %v512 = vxor.u32 %v511, 2147483648
    %v513 = vsel %vm430, %v512, %v511
    %v514 = vsub.s32 4, %v490
    %v515 = vsel %vm430, %v514, %v490
    %v516 = vsel %vm429, %v115, %v513
    %v517 = vsel %vm429, 0, %v515
    %v518 = vcosq.f32.pop %v516
    %v519 = vsinq.f32.pop %v516
    %vm520 = vweird.f32 %v115
    %v521 = vadd.s32 %v517, 3
    %v522 = vand.u32 %v521, 3
    %vm523 = vcmp.lt.s32.totalorder %v522, 2
    %vm524 = vcmp.eq.s32.totalorder %v522, 0
    %v525 = vxor.u32 %v519, 2147483648
    %v526 = vsel %vm524, %v518, %v525
    %vm527 = vcmp.eq.s32.totalorder %v522, 2
    %v528 = vxor.u32 %v518, 2147483648
    %v529 = vsel %vm527, %v528, %v519
    %v530 = vsel %vm523, %v526, %v529
    %v531 = vsel %vm520, nan, %v530
    %532 = vset.pattern.permute.xlu0 2
    %533 = vperm.xlu0 %532, %v68
    %v534 = vpop.permute.xlu0 %533
    %536 = vset.pattern.permute.xlu0 2
    %537 = vperm.xlu0 %536, %v69
    %v538 = vpop.permute.xlu0 %537
    %540 = vset.pattern.permute.xlu0 2
    %541 = vperm.xlu0 %540, %v70
    %v542 = vpop.permute.xlu0 %541
    %544 = vset.pattern.permute.xlu0 2
    %545 = vperm.xlu0 %544, %v71
    %v546 = vpop.permute.xlu0 %545
    %v548 = vmul.f32 %v56, %v534
    %v549 = vmul.f32 %v62, %v538
    %v550 = vmul.f32 %v66, %v542
    %v551 = vmul.f32 %v67, %v546
    %v552 = vsub.f32 1.0, %v68
    %v553 = vsub.f32 1.0, %v69
    %v554 = vsub.f32 1.0, %v70
    %v555 = vsub.f32 1.0, %v71
    %557 = vset.pattern.permute.xlu0 2
    %558 = vperm.xlu0 %557, %v552
    %v559 = vpop.permute.xlu0 %558
    %562 = vset.pattern.permute.xlu0 2
    %563 = vperm.xlu0 %562, %v553
    %v564 = vpop.permute.xlu0 %563
    %567 = vset.pattern.permute.xlu0 2
    %568 = vperm.xlu0 %567, %v554
    %v569 = vpop.permute.xlu0 %568
    %572 = vset.pattern.permute.xlu0 2
    %573 = vperm.xlu0 %572, %v555
    %v574 = vpop.permute.xlu0 %573
    %v576 = vmul.f32 %v219, %v559
    %v577 = vmul.f32 %v323, %v564
    %v578 = vmul.f32 %v427, %v569
    %v579 = vmul.f32 %v531, %v574
    %v580 = vadd.f32 %v548, %v576
    %v581 = vadd.f32 %v549, %v577
    %v582 = vadd.f32 %v550, %v578
    %v583 = vadd.f32 %v551, %v579
    %584 = vxpose.xlu0.b32.start [1/16] %v580, 128
    %585 = vxpose.xlu0.b32.cont [2/16] %v581, 128
    %586 = vxpose.xlu0.b32.cont [3/16] %v582, 128
    %587 = vxpose.xlu0.b32.cont [4/16] %v583, 128
    %588 = vxpose.xlu0.b32.cont [5/16] 0.0, 128
    %589 = vxpose.xlu0.b32.cont [6/16] 0.0, 128
    %590 = vxpose.xlu0.b32.cont [7/16] 0.0, 128
    %591 = vxpose.xlu0.b32.cont [8/16] 0.0, 128
    %592 = vxpose.xlu0.b32.cont [9/16] 0.0, 128
    %593 = vxpose.xlu0.b32.cont [10/16] 0.0, 128
    %594 = vxpose.xlu0.b32.cont [11/16] 0.0, 128
    %595 = vxpose.xlu0.b32.cont [12/16] 0.0, 128
    %596 = vxpose.xlu0.b32.cont [13/16] 0.0, 128
    %597 = vxpose.xlu0.b32.cont [14/16] 0.0, 128
    %598 = vxpose.xlu0.b32.cont [15/16] 0.0, 128
    %599 = vxpose.xlu0.b32.end [16/16] 0.0, 128
    %v600 = vpop.trf.xlu0
    %v601 = vpop.trf.xlu0
    %v602 = vpop.trf.xlu0
    %v603 = vpop.trf.xlu0
    %v604 = vpop.trf.xlu0
    %v605 = vpop.trf.xlu0
    %v606 = vpop.trf.xlu0
    %v607 = vpop.trf.xlu0
    %v608 = vpop.trf.xlu0
    %v609 = vpop.trf.xlu0
    %v610 = vpop.trf.xlu0
    %v611 = vpop.trf.xlu0
    %v612 = vpop.trf.xlu0
    %v613 = vpop.trf.xlu0
    %v614 = vpop.trf.xlu0
    %v615 = vpop.trf.xlu0
    %vm616 = vcmask 220160
    %617 = vst.msk [vmem:[%s2] sm:$0xff] %vm616, %v600
    %618 = vst.msk [vmem:[%s2 + $0x8] sm:$0xff] %vm616, %v601
    %619 = vst.msk [vmem:[%s2 + $0x10] sm:$0xff] %vm616, %v602
    %620 = vst.msk [vmem:[%s2 + $0x18] sm:$0xff] %vm616, %v603
    %621 = vst.msk [vmem:[%s2 + $0x20] sm:$0xff] %vm616, %v604
    %622 = vst.msk [vmem:[%s2 + $0x28] sm:$0xff] %vm616, %v605
    %623 = vst.msk [vmem:[%s2 + $0x30] sm:$0xff] %vm616, %v606
    %624 = vst.msk [vmem:[%s2 + $0x38] sm:$0xff] %vm616, %v607
    %625 = vst.msk [vmem:[%s2 + $0x40] sm:$0xff] %vm616, %v608
    %626 = vst.msk [vmem:[%s2 + $0x48] sm:$0xff] %vm616, %v609
    %627 = vst.msk [vmem:[%s2 + $0x50] sm:$0xff] %vm616, %v610
    %628 = vst.msk [vmem:[%s2 + $0x58] sm:$0xff] %vm616, %v611
    %629 = vst.msk [vmem:[%s2 + $0x60] sm:$0xff] %vm616, %v612
    %630 = vst.msk [vmem:[%s2 + $0x68] sm:$0xff] %vm616, %v613
    %631 = vst.msk [vmem:[%s2 + $0x70] sm:$0xff] %vm616, %v614
    %632 = vst.msk [vmem:[%s2 + $0x78] sm:$0xff] %vm616, %v615
    // Predicated region
    $region18: #{freq_encode_pallas.1} parent=1 // pred_check
      _
    $region19: #{freq_encode_pallas.1} parent=1 // pred_check_branch
      %634 = sbr.rel (0) target = $region21
    $region20: #{freq_encode_pallas.1} parent=1 // pred_region
      _
    $region21: #{freq_encode_pallas.1} parent=1 // pred_fallthru
      _
    // Predicated region
    $region22: #{freq_encode_pallas.1} parent=1 // pred_check
      _
    $region23: #{freq_encode_pallas.1} parent=1 // pred_check_branch
      %636 = sbr.rel (0) target = $region25
    $region24: #{freq_encode_pallas.1} parent=1 // pred_region
      _
    $region25: #{freq_encode_pallas.1} parent=1 // pred_fallthru
      _
    %637 = vsyncpa [#allocation3], 1
    %638 = vsyncpa [#allocation5], 1

</llo_original>
